<compile_context>
chip_gen: v7x
topology: tpu7x:2x2x1
jax: 0.10.0
libtpu: 0.0.40
codegen_flags: <defaults>
</compile_context>

<pallas_src>
import functools

import jax
import jax.numpy as jnp
from jax.experimental import pallas as pl
from jax.experimental.pallas import tpu as pltpu


# ----------------------------------------------------------------------------
# Hardware-aware sizing helpers
# ----------------------------------------------------------------------------

def _vmem_capacity_bytes():
    try:
        return int(pltpu.get_tpu_info().vmem_capacity_bytes)
    except Exception:
        return 64 * 1024 * 1024          # conservative (v7x per-core VMEM)


def _default_block_budget(vmem_cap):
    # ~VMEM/8 per input block (double-buffering costs 2x this), 1..16 MiB.
    return int(min(16 << 20, max(1 << 20, vmem_cap // 8)))


def _vmem_limit(block_bytes, vmem_cap):
    # double-buffered input + headroom, clamped to physical VMEM
    return int(min(vmem_cap, max(32 << 20, 2 * block_bytes + (8 << 20))))


# ----------------------------------------------------------------------------
# Kernels
# ----------------------------------------------------------------------------

def _hloss_batch_kernel(x_ref, o_ref):
    """Batch-blocked path: whole (C, HW) per batch element in one block."""
    x = x_ref[...].astype(jnp.float32)               # (Bb, C, HW)
    m = jnp.max(x, axis=1, keepdims=True)            # (Bb, 1, HW)
    s = x - m
    e = jnp.exp(s)
    z = jnp.sum(e, axis=1, keepdims=True)            # (Bb, 1, HW)
    num = jnp.sum(e * s, axis=1, keepdims=True)      # (Bb, 1, HW)
    ent = num / z - jnp.log(z)                       # sum_c p*logp per column
    # Per-row partial sums; any garbage rows in an overhanging last batch
    # block land in the out-of-bounds output region and are discarded.
    o_ref[...] = jnp.sum(ent, axis=2)                # (Bb, 1)


def _hloss_spatial_kernel(x_ref, o_ref, acc_ref, *, valid_cols, tail_base,
                          needs_mask):
    """Spatial-tiled path: one batch element, lane-tiled over H*W."""
    j = pl.program_id(2)

    @pl.when(j == 0)
    def _():
        acc_ref[...] = jnp.zeros_like(acc_ref)

    x = x_ref[...].astype(jnp.float32)               # (C, T), C on sublanes
    m = jnp.max(x, axis=0, keepdims=True)            # (1, T)
    s = x - m
    e = jnp.exp(s)
    z = jnp.sum(e, axis=0, keepdims=True)            # (1, T)
    num = jnp.sum(e * s, axis=0, keepdims=True)      # (1, T)
    ent = num / z - jnp.log(z)                       # (1, T) = sum_c p*logp

    if needs_mask:
        # Only the last *global* spatial tile can overhang HW; gate the
        # iota+cmp+select so all other tiles take the unmasked path.
        is_tail = jnp.logical_and(
            pl.program_id(1) == pl.num_programs(1) - 1,
            j == pl.num_programs(2) - 1)

        @pl.when(is_tail)
        def _():
            col = tail_base + jax.lax.broadcasted_iota(jnp.int32, ent.shape, 1)
            acc_ref[...] += jnp.where(col < valid_cols, ent, 0.0)

        @pl.when(jnp.logical_not(is_tail))
        def _():
            acc_ref[...] += ent
    else:
        acc_ref[...] += ent

    @pl.when(j == pl.num_programs(2) - 1)
    def _():
        o_ref[...] = jnp.sum(acc_ref[...], keepdims=True)   # (1, 1)


def _hloss_rows_kernel(x_ref, o_ref):
    """2-D (B, C) path: batch on sublanes, softmax axis C on lanes."""
    x = x_ref[...].astype(jnp.float32)               # (TB, C)
    m = jnp.max(x, axis=-1, keepdims=True)           # (TB, 1)
    s = x - m
    e = jnp.exp(s)
    z = jnp.sum(e, axis=-1, keepdims=True)
    num = jnp.sum(e * s, axis=-1, keepdims=True)
    o_ref[...] = num / z - jnp.log(z)                # (TB, 1) per-row entropy


# ----------------------------------------------------------------------------
# pallas_call drivers
# ----------------------------------------------------------------------------

def _hloss_batched(x3, budget, per_batch_bytes, vmem_cap):
    """Small per-batch slabs: block over batch, full (C, HW) per element."""
    Bg, C, HW = x3.shape
    Bb = int(min(Bg, max(1, budget // max(1, per_batch_bytes))))
    nb = pl.cdiv(Bg, Bb)
    block_bytes = Bb * per_batch_bytes

    partials = pl.pallas_call(
        _hloss_batch_kernel,
        out_shape=jax.ShapeDtypeStruct((Bg, 1), jnp.float32),
        grid_spec=pltpu.PrefetchScalarGridSpec(
            num_scalar_prefetch=0,
            grid=(nb,),
            in_specs=[pl.BlockSpec((Bb, C, HW), lambda i: (i, 0, 0))],
            out_specs=pl.BlockSpec((Bb, 1), lambda i: (i, 0)),
        ),
        compiler_params=pltpu.CompilerParams(
            dimension_semantics=("parallel",),
            vmem_limit_bytes=_vmem_limit(block_bytes, vmem_cap),
        ),
    )(x3)
    return jnp.sum(partials)


def _hloss_spatial(x3, budget, itemsize, vmem_cap):
    """Large per-batch slabs: one batch element per block, lane-tiled H*W."""
    Bg, C, HW = x3.shape
    if HW <= 128:
        T = HW
    else:
        t = max(128, (budget // max(1, C * itemsize)) // 128 * 128)
        T = min(t, pl.cdiv(HW, 128) * 128)
    n_tiles = pl.cdiv(HW, T)
    needs_mask = (n_tiles * T) != HW

    # Split the spatial axis into a second "parallel" grid dim so both v7x
    # TensorCores share HBM bandwidth even when Bg is small/odd.
    P = 2 if (n_tiles >= 2 and n_tiles % 2 == 0) else 1
    n_inner = n_tiles // P

    kernel = functools.partial(
        _hloss_spatial_kernel,
        valid_cols=HW,
        tail_base=(n_tiles - 1) * T,
        needs_mask=needs_mask)

    block_bytes = C * T * itemsize
    partials = pl.pallas_call(
        kernel,
        out_shape=jax.ShapeDtypeStruct((Bg, P), jnp.float32),
        grid_spec=pltpu.PrefetchScalarGridSpec(
            num_scalar_prefetch=0,
            grid=(Bg, P, n_inner),
            in_specs=[pl.BlockSpec((None, C, T),
                                   lambda i, p, j: (i, 0, p * n_inner + j))],
            out_specs=pl.BlockSpec((1, 1), lambda i, p, j: (i, p)),
            scratch_shapes=[pltpu.VMEM((1, T), jnp.float32)],
        ),
        compiler_params=pltpu.CompilerParams(
            dimension_semantics=("parallel", "parallel", "arbitrary"),
            vmem_limit_bytes=_vmem_limit(block_bytes, vmem_cap),
        ),
    )(x3)
    return jnp.sum(partials)


def _hloss_2d(x, budget, itemsize, vmem_cap):
    """(B, C) logits path — no HBM transpose; C stays on lanes."""
    B, C = x.shape
    rows = (budget // max(1, C * itemsize)) // 8 * 8
    TB = B if rows >= B else max(8, rows)
    nb = pl.cdiv(B, TB)
    block_bytes = TB * C * itemsize

    per_row = pl.pallas_call(
        _hloss_rows_kernel,
        out_shape=jax.ShapeDtypeStruct((B, 1), jnp.float32),
        grid_spec=pltpu.PrefetchScalarGridSpec(
            num_scalar_prefetch=0,
            grid=(nb,),
            in_specs=[pl.BlockSpec((TB, C), lambda i: (i, 0))],
            out_specs=pl.BlockSpec((TB, 1), lambda i: (i, 0)),
        ),
        compiler_params=pltpu.CompilerParams(
            dimension_semantics=("parallel",),
            vmem_limit_bytes=_vmem_limit(block_bytes, vmem_cap),
        ),
    )(x)
    return jnp.sum(per_row)


# ----------------------------------------------------------------------------
# Public entry point
# ----------------------------------------------------------------------------

def hloss(x, block_bytes_budget=None):
    """Pallas implementation of HLoss.forward for NCHW or (B, C) inputs."""
    b = x.shape[0]
    itemsize = x.dtype.itemsize                       # dtype-aware (bf16 stays bf16 on the wire)
    vmem_cap = _vmem_capacity_bytes()
    if block_bytes_budget is None:
        block_bytes_budget = _default_block_budget(vmem_cap)

    if x.ndim == 2:
        total = _hloss_2d(x, block_bytes_budget, itemsize, vmem_cap)
    elif x.ndim == 4:
        B, C, H, W = x.shape
        x3 = x.reshape(B, C, H * W)                   # free reshape, no HBM transpose
        per_batch_bytes = C * H * W * itemsize
        if per_batch_bytes <= block_bytes_budget:
            total = _hloss_batched(x3, block_bytes_budget, per_batch_bytes, vmem_cap)
        else:
            total = _hloss_spatial(x3, block_bytes_budget, itemsize, vmem_cap)
    else:
        raise ValueError("expected 2-D (B, C) or 4-D NCHW input")

    # final 1/B scaling outside the kernel
    return total / b


def hloss_ref(x):
    # pure-JAX reference matching the PyTorch module
    p = jax.nn.softmax(x, axis=1)
    logp = jax.nn.log_softmax(x, axis=1)
    return jnp.sum(p * logp) / x.shape[0]


if __name__ == "__main__":
    key = jax.random.PRNGKey(0)
    k1, k2, k3, k4 = jax.random.split(key, 4)

    # 1) 4-D NCHW (the domain_disentangle usage): batch-blocked single-step path.
    x = jax.random.normal(k1, (2, 4, 16, 16), dtype=jnp.float32)
    out = hloss(x)
    jax.block_until_ready(out)
    ref = hloss_ref(x)
    assert jnp.allclose(out, ref, atol=1e-5, rtol=1e-5), (out, ref)

    # 2) Spatial-tiled path (tail mask + 2-way parallel spatial split),
    #    forced at small shape by a tiny block budget.
    x_a = jax.random.normal(k2, (2, 4, 20, 20), dtype=jnp.float32)
    out_a = hloss(x_a, block_bytes_budget=4096)
    jax.block_until_ready(out_a)
    ref_a = hloss_ref(x_a)
    assert jnp.allclose(out_a, ref_a, atol=1e-5, rtol=1e-5), (out_a, ref_a)

    # 3) Batch-blocked path with a batch tail (Bg % Bb != 0).
    x_b = jax.random.normal(k3, (3, 4, 16, 16), dtype=jnp.float32)
    out_b = hloss(x_b, block_bytes_budget=8192)
    jax.block_until_ready(out_b)
    ref_b = hloss_ref(x_b)
    assert jnp.allclose(out_b, ref_b, atol=1e-5, rtol=1e-5), (out_b, ref_b)

    # 4) 2-D (B, C) logits path (no HBM transpose).
    x2 = jax.random.normal(k4, (8, 32), dtype=jnp.float32)
    out2 = hloss(x2)
    jax.block_until_ready(out2)
    ref2 = hloss_ref(x2)
    assert jnp.allclose(out2, ref2, atol=1e-5, rtol=1e-5), (out2, ref2)

    print("KERNEL_OK")
</pallas_src>

<mosaic_0001>
module attributes {stable_mosaic.version = 11 : i64} {
  func.func @_hloss_batch_kernel(%arg0: i32, %arg1: memref<2x4x256xf32, #tpu.memory_space<vmem>>, %arg2: memref<2x1xf32, #tpu.memory_space<vmem>>) attributes {dimension_semantics = [#tpu.dimension_semantics<parallel>], iteration_bounds = array<i64: 1>, scalar_prefetch = 0 : i64, scratch_operands = 0 : i64, tpu.core_type = #tpu.core_type<tc>, window_params = [{transform_indices = @transform_0, window_bounds = array<i64: 2, 4, 256>}, {transform_indices = @transform_1, window_bounds = array<i64: 2, 1>}]} {
    %c0 = arith.constant 0 : index
    %c0_0 = arith.constant 0 : index
    %c0_1 = arith.constant 0 : index
    %0 = vector.load %arg1[%c0, %c0_0, %c0_1] : memref<2x4x256xf32, #tpu.memory_space<vmem>>, vector<2x4x256xf32>
    %cst = arith.constant dense<0xFF800000> : vector<2x256xf32>
    %1 = vector.multi_reduction <maximumf>, %0, %cst [1] : vector<2x4x256xf32> to vector<2x256xf32>
    %2 = vector.shape_cast %1 : vector<2x256xf32> to vector<2x1x256xf32>
    %3 = vector.broadcast %2 : vector<2x1x256xf32> to vector<2x4x256xf32>
    %4 = arith.subf %0, %3 : vector<2x4x256xf32>
    %5 = math.exp %4 : vector<2x4x256xf32>
    %cst_2 = arith.constant dense<0.000000e+00> : vector<2x256xf32>
    %6 = vector.multi_reduction <add>, %5, %cst_2 [1] : vector<2x4x256xf32> to vector<2x256xf32>
    %7 = vector.shape_cast %6 : vector<2x256xf32> to vector<2x1x256xf32>
    %8 = arith.mulf %5, %4 : vector<2x4x256xf32>
    %cst_3 = arith.constant dense<0.000000e+00> : vector<2x256xf32>
    %9 = vector.multi_reduction <add>, %8, %cst_3 [1] : vector<2x4x256xf32> to vector<2x256xf32>
    %10 = vector.shape_cast %9 : vector<2x256xf32> to vector<2x1x256xf32>
    %11 = arith.divf %10, %7 : vector<2x1x256xf32>
    %12 = math.log %7 : vector<2x1x256xf32>
    %13 = arith.subf %11, %12 : vector<2x1x256xf32>
    %cst_4 = arith.constant dense<0.000000e+00> : vector<2x1xf32>
    %14 = vector.multi_reduction <add>, %13, %cst_4 [2] : vector<2x1x256xf32> to vector<2x1xf32>
    %c0_5 = arith.constant 0 : index
    %c0_6 = arith.constant 0 : index
    %15 = vector.load %arg2[%c0_5, %c0_6] : memref<2x1xf32, #tpu.memory_space<vmem>>, vector<2x1xf32>
    tpu.vector_store %arg2[%c0_5, %c0_6], %14 {strides = array<i32>} : memref<2x1xf32, #tpu.memory_space<vmem>>, vector<2x1xf32>,
    return
  }
  func.func @transform_0(%arg0: i32) -> (i32, i32, i32) {
    %c0_i32 = arith.constant 0 : i32
    %c0_i32_0 = arith.constant 0 : i32
    %c0_i32_1 = arith.constant 0 : i32
    return %arg0, %c0_i32, %c0_i32_0 : i32, i32, i32
  }
  func.func @transform_1(%arg0: i32) -> (i32, i32) {
    %c0_i32 = arith.constant 0 : i32
    %c0_i32_0 = arith.constant 0 : i32
    return %arg0, %c0_i32 : i32, i32
  }
}

</mosaic_0001>

<llo_original>
// kernel: tpu_custom_call.1
$region0: #{tpu_custom_call.1}
  #allocation0 [shape = 'u32[]', space=smem, size = 0x4, offset = 0x4, fixed_abs, tag = 'smem constant byte address 0x4 - core index']
  #allocation1 [shape = 'u32[144,128]{1,0:T(1,128)}', space=vmem, size = 0x12000, scoped, tag = 'internal scratch']
  %s0 = inlined_call_operand.hbm [shape: f32[2,4,256], index: 0, kind: input, shape index: {}]
  %s1 = inlined_call_operand.vmem [shape: f32[2,1], index: 1, kind: output, shape index: {}]
  %s2 = sld [smem:[#allocation0]]
  $region18: #{tpu_custom_call.1} parent=0
    _
  %s4 = ssub.s32 1, %s2
  %s5 = scalar_select 0, %s4, %s2
  $region1: #{tpu_custom_call.1} parent=0
    #allocation2 [shape = 'u8[8192]{0}', space=vmem, size = 0x2000, scoped, tag = 'input window, operand 0, single buffered']
    #allocation3 [shape = 's32[1]{0}', space=sflag, size = 0x4, scoped, tag = 'scoped memory for tpu_custom_call.1']
    %6 = vsyncpa [#allocation3], 0
    // Predicated region
    $region2: #{tpu_custom_call.1} parent=1 // pred_check
      _
    $region3: #{tpu_custom_call.1} parent=1 // pred_check_branch
      %8 = sbr.rel (0) target = $region5
    $region4: #{tpu_custom_call.1} parent=1 // pred_region
      %s10 = ssub.s32 256, 256
      %11 = vsyncadd [#allocation3], %s10
      %s12 = sshll.u32 [#allocation2], 4
      %s13 = int_to_ptr.vmem [resolvable:$true] %s12
      %18 = dma.hbm_to_vmem [thread:$0]  %s0, 256, %s13, [#allocation3], 128, 128, 8
    $region5: #{tpu_custom_call.1} parent=1 // pred_fallthru
      _
    // Predicated region
    $region6: #{tpu_custom_call.1} parent=1 // pred_check
      _
    $region7: #{tpu_custom_call.1} parent=1 // pred_check_branch
      %20 = sbr.rel (0) target = $region9
    $region8: #{tpu_custom_call.1} parent=1 // pred_region
      %21 = dma.done [#allocation3], 256
    $region9: #{tpu_custom_call.1} parent=1 // pred_fallthru
      _
    %v22 = vld [vmem:[#allocation2] sm:$0xff]
    %v23 = vld [vmem:[#allocation2 + $0x8] sm:$0xff]
    %v26 = vcombine.high %v22, %v22
    %v27 = vcombine.high %v23, %v23
    %vm30 = vcmask 1043456
    %v31 = vsel %vm30, %v22, -inf
    %v32 = vrot.slane %v31, 4
    %v33 = vmax.f32 %v31, %v32
    %v34 = vrot.slane %v33, 2
    %v35 = vmax.f32 %v33, %v34
    %v36 = vrot.slane %v35, 1
    %v37 = vmax.f32 %v35, %v36
    %v38 = vsel %vm30, %v26, -inf
    %v39 = vrot.slane %v38, 4
    %v40 = vmax.f32 %v38, %v39
    %v41 = vrot.slane %v40, 2
    %v42 = vmax.f32 %v40, %v41
    %v43 = vrot.slane %v42, 1
    %v44 = vmax.f32 %v42, %v43
    %v45 = vsel %vm30, %v23, -inf
    %v46 = vrot.slane %v45, 4
    %v47 = vmax.f32 %v45, %v46
    %v48 = vrot.slane %v47, 2
    %v49 = vmax.f32 %v47, %v48
    %v50 = vrot.slane %v49, 1
    %v51 = vmax.f32 %v49, %v50
    %v52 = vsel %vm30, %v27, -inf
    %v53 = vrot.slane %v52, 4
    %v54 = vmax.f32 %v52, %v53
    %v55 = vrot.slane %v54, 2
    %v56 = vmax.f32 %v54, %v55
    %v57 = vrot.slane %v56, 1
    %v58 = vmax.f32 %v56, %v57
    %v63 = vcombine.low %v37, %v44
    %v64 = vcombine.low %v51, %v58
    %v67 = vsub.f32 %v22, %v63
    %v68 = vsub.f32 %v23, %v64
    %v69 = vmul.f32 %v67, 1.442695
    %v70 = vpow.pop %v69
    %v71 = vmul.f32 %v68, 1.442695
    %v72 = vpow.pop %v71
    %v75 = vcombine.high %v70, %v70
    %v76 = vcombine.high %v72, %v72
    %v79 = vsel %vm30, %v70, 0.0
    %v80 = vrot.slane %v79, 4
    %v81 = vadd.f32 %v79, %v80
    %v82 = vrot.slane %v81, 2
    %v83 = vadd.f32 %v81, %v82
    %v84 = vrot.slane %v83, 1
    %v85 = vadd.f32 %v83, %v84
    %v86 = vsel %vm30, %v75, 0.0
    %v87 = vrot.slane %v86, 4
    %v88 = vadd.f32 %v86, %v87
    %v89 = vrot.slane %v88, 2
    %v90 = vadd.f32 %v88, %v89
    %v91 = vrot.slane %v90, 1
    %v92 = vadd.f32 %v90, %v91
    %v93 = vsel %vm30, %v72, 0.0
    %v94 = vrot.slane %v93, 4
    %v95 = vadd.f32 %v93, %v94
    %v96 = vrot.slane %v95, 2
    %v97 = vadd.f32 %v95, %v96
    %v98 = vrot.slane %v97, 1
    %v99 = vadd.f32 %v97, %v98
    %v100 = vsel %vm30, %v76, 0.0
    %v101 = vrot.slane %v100, 4
    %v102 = vadd.f32 %v100, %v101
    %v103 = vrot.slane %v102, 2
    %v104 = vadd.f32 %v102, %v103
    %v105 = vrot.slane %v104, 1
    %v106 = vadd.f32 %v104, %v105
    %v107 = vmul.f32 %v70, %v67
    %v108 = vmul.f32 %v72, %v68
    %v111 = vcombine.high %v107, %v107
    %v112 = vcombine.high %v108, %v108
    %v115 = vsel %vm30, %v107, 0.0
    %v116 = vrot.slane %v115, 4
    %v117 = vadd.f32 %v115, %v116
    %v118 = vrot.slane %v117, 2
    %v119 = vadd.f32 %v117, %v118
    %v120 = vrot.slane %v119, 1
    %v121 = vadd.f32 %v119, %v120
    %v122 = vsel %vm30, %v111, 0.0
    %v123 = vrot.slane %v122, 4
    %v124 = vadd.f32 %v122, %v123
    %v125 = vrot.slane %v124, 2
    %v126 = vadd.f32 %v124, %v125
    %v127 = vrot.slane %v126, 1
    %v128 = vadd.f32 %v126, %v127
    %v129 = vsel %vm30, %v108, 0.0
    %v130 = vrot.slane %v129, 4
    %v131 = vadd.f32 %v129, %v130
    %v132 = vrot.slane %v131, 2
    %v133 = vadd.f32 %v131, %v132
    %v134 = vrot.slane %v133, 1
    %v135 = vadd.f32 %v133, %v134
    %v136 = vsel %vm30, %v112, 0.0
    %v137 = vrot.slane %v136, 4
    %v138 = vadd.f32 %v136, %v137
    %v139 = vrot.slane %v138, 2
    %v140 = vadd.f32 %v138, %v139
    %v141 = vrot.slane %v140, 1
    %v142 = vadd.f32 %v140, %v141
    %v143 = vrcp.pop %v85
    %v144 = vmul.f32 %v121, %v143
    %v145 = vrcp.pop %v92
    %v146 = vmul.f32 %v128, %v145
    %v147 = vrcp.pop %v99
    %v148 = vmul.f32 %v135, %v147
    %v149 = vrcp.pop %v106
    %v150 = vmul.f32 %v142, %v149
    %v151 = vlog2.pop %v85
    %v152 = vmul.f32 %v151, 0.6931472
    %v153 = vlog2.pop %v92
    %v154 = vmul.f32 %v153, 0.6931472
    %v155 = vlog2.pop %v99
    %v156 = vmul.f32 %v155, 0.6931472
    %v157 = vlog2.pop %v106
    %v158 = vmul.f32 %v157, 0.6931472
    %v159 = vsub.f32 %v144, %v152
    %v160 = vsub.f32 %v146, %v154
    %v161 = vsub.f32 %v148, %v156
    %v162 = vsub.f32 %v150, %v158
    %v163 = vadd.f32 %v159, %v160
    %164 = vadd.xlane.f32.xlu0 %v163
    %v165 = vpop.xlane.xlu0 %164
    %v166 = vadd.f32 %v161, %v162
    %167 = vadd.xlane.f32.xlu0 %v166
    %v168 = vpop.xlane.xlu0 %167
    %vm171 = vcmask 1041409
    %v172 = vsel %vm171, %v168, %v165
    %vm174 = vcmask 1024
    %175 = vst.msk [vmem:[%s1] sm:$0x3] %vm174, %v172
    // Predicated region
    $region10: #{tpu_custom_call.1} parent=1 // pred_check
      _
    $region11: #{tpu_custom_call.1} parent=1 // pred_check_branch
      %177 = sbr.rel (0) target = $region13
    $region12: #{tpu_custom_call.1} parent=1 // pred_region
      _
    $region13: #{tpu_custom_call.1} parent=1 // pred_fallthru
      _
    // Predicated region
    $region14: #{tpu_custom_call.1} parent=1 // pred_check
      _
    $region15: #{tpu_custom_call.1} parent=1 // pred_check_branch
      %179 = sbr.rel (0) target = $region17
    $region16: #{tpu_custom_call.1} parent=1 // pred_region
      _
    $region17: #{tpu_custom_call.1} parent=1 // pred_fallthru
      _
    %180 = vsyncpa [#allocation3], 1

</llo_original>
